<compile_context>
chip_gen: v5e
topology: v5e:2x2
jax: 0.10.0
libtpu: 0.0.40
codegen_flags: <defaults>
</compile_context>

<pallas_src>
import jax
import jax.numpy as jnp
from jax.experimental import pallas as pl
from jax.experimental.pallas import tpu as pltpu

SIGMA_INIT = -2.0
H_SIGMA_INIT = 0.0
FEAT = 25               # feature dimension implied by model3_m: (25, 2)
OUT = 2                 # output dimension
HID = 4                 # fused hidden width: [r3_0, r3_1, r2_0, r2_1]
SLAB_ROWS = 32          # 25 fused-weight rows + 4 W_proj rows + 1 bias row + 2 pad
PROJ_ROW = FEAT         # row 25: start of the (4, 2) alpha-folded projection
BIAS_ROW = FEAT + HID   # row 29: constant-branch bias in lanes 0-1


def _nvgs_kernel(x_ref, slab_ref, o_ref):
    # x_ref    : VMEM (B, 32)   features zero-padded beyond column 24
    # slab_ref : VMEM (32, 4)   rows 0-24: [w3 | w2-in-row-0]; rows 25-28: W_proj;
    #                           row 29: bias (lanes 0-1); rows 30-31: zero pad
    # o_ref    : VMEM (B, 2)
    x = x_ref[...]                                                    # (B, 32)
    slab = slab_ref[...]                                              # (32, 4)

    # One MXU matmul + one EUP tanh covers both the "simple" (w2) and
    # "complex" (w3) branches; padded x columns zero out the non-weight rows.
    y = jnp.tanh(jnp.dot(x, slab, preferred_element_type=jnp.float32))  # (B, 4)

    w_proj = slab[PROJ_ROW:PROJ_ROW + HID, 0:OUT]                     # (4, 2)
    bias = slab[BIAS_ROW:BIAS_ROW + 1, 0:OUT]                         # (1, 2)

    # Single combined (B,4)@(4,2) projection + bias, one full-block store.
    o_ref[...] = (jnp.dot(y, w_proj, preferred_element_type=jnp.float32)
                  + bias).astype(o_ref.dtype)


def _call_kernel(x_pad, slab):
    B = x_pad.shape[0]
    return pl.pallas_call(
        _nvgs_kernel,
        out_shape=jax.ShapeDtypeStruct((B, OUT), jnp.float32),
        in_specs=[
            pl.BlockSpec(memory_space=pltpu.MemorySpace.VMEM),   # x_pad (B, 32)
            pl.BlockSpec(memory_space=pltpu.MemorySpace.VMEM),   # slab  (32, 4)
        ],
        out_specs=pl.BlockSpec(memory_space=pltpu.MemorySpace.VMEM),
    )(x_pad, slab)


def _sample(params, key):
    """alpha + reparameterized weight samples (fused RNG: 1 gumbel + 1 normal(58))."""
    kg, kn = jax.random.split(key, 2)

    # alpha = RelaxedOneHotCategorical(exp(log_temp), logits=gamma).rsample() + 0.05
    temp = jnp.exp(params["log_temp"])                      # (1,)
    gumb = jax.random.gumbel(kg, (3,), jnp.float32)
    alpha = jax.nn.softmax((params["gamma"] + gumb) / temp) + 0.05

    # Single normal(58) draw sliced into the four weight samples.
    noise = jax.random.normal(kn, (58,), jnp.float32)
    w1 = params["model1_m"] + jnp.exp(params["model1_s"]) * noise[0:2]
    w2 = params["model2_m"] + jnp.exp(params["model2_s"]) * noise[2:4].reshape(1, 2)
    w3 = params["model3_m"] + jnp.exp(params["model3_s"]) * noise[4:54].reshape(25, 2)
    wsm = params["model_sm_m"] + jnp.exp(params["model_sm_s"]) * noise[54:58].reshape(2, 2)
    return alpha, w1, w2, w3, wsm


@jax.jit
def nvgs_forward(x, params, key):
    """Stochastic forward of NVGSSearchToyController (== self.net(x)).

    x: (B, 25) f32.  Returns logits (B, 2) f32.
    All sampling + slab packing is traced inside this jit so the whole
    forward is one fused dispatch chain ending in a single pallas_call.
    """
    x = x.astype(jnp.float32)
    B = x.shape[0]
    alpha, w1, w2, w3, wsm = _sample(params, key)

    # Constant branch folded out of the kernel: bias = (alpha0 * tanh(w1)) @ wsm.
    bias = (alpha[0] * jnp.tanh(w1)) @ wsm                 # (2,)

    # Fuse the "simple" (w2) and "complex" (w3) matmuls into one (25, 4) weight.
    w2_full = jnp.zeros((FEAT, OUT), jnp.float32).at[0, :].set(w2[0, :])
    w_comb = jnp.concatenate([w3, w2_full], axis=1)        # (25, 4)

    # Fold alpha1/alpha2 into the post-tanh projection; rows 0-1 act on r3,
    # rows 2-3 act on r2 (matching the column order of w_comb / y).
    w_proj = jnp.concatenate([alpha[2] * wsm, alpha[1] * wsm], axis=0)  # (4, 2)

    # Single (32, 4) slab: weights + projection + bias in one VMEM input.
    slab = jnp.zeros((SLAB_ROWS, HID), jnp.float32)
    slab = slab.at[0:FEAT, :].set(w_comb)
    slab = slab.at[PROJ_ROW:PROJ_ROW + HID, 0:OUT].set(w_proj)
    slab = slab.at[BIAS_ROW, 0:OUT].set(bias)

    # Zero-pad x features so the single matmul consumes the full slab.
    x_pad = jnp.zeros((B, SLAB_ROWS), jnp.float32).at[:, 0:FEAT].set(x)

    return _call_kernel(x_pad, slab)


def init_params(key):
    """Deterministic parameter init matching the PyTorch module's shapes.

    xavier_uniform is mimicked with uniform(-bound, bound),
    bound = sqrt(6 / (fan_in + fan_out)); model1_m stays at ones as in torch.
    """
    k2, k3, k4 = jax.random.split(key, 3)

    def xavier(k, shape):
        fan_out, fan_in = shape[0], shape[1]
        bound = jnp.sqrt(6.0 / (fan_in + fan_out))
        return jax.random.uniform(k, shape, jnp.float32, -bound, bound)

    return {
        "model1_m": jnp.ones((2,), jnp.float32),
        "model2_m": xavier(k2, (1, 2)),
        "model3_m": xavier(k3, (25, 2)),
        "model_sm_m": xavier(k4, (2, 2)),
        "model1_s": jnp.ones((2,), jnp.float32) * SIGMA_INIT,
        "model2_s": jnp.ones((1, 2), jnp.float32) * SIGMA_INIT,
        "model3_s": jnp.ones((25, 2), jnp.float32) * SIGMA_INIT,
        "model_sm_s": jnp.ones((2, 2), jnp.float32) * SIGMA_INIT,
        "gamma": jnp.ones((3,), jnp.float32),
        "log_temp": jnp.zeros((1,), jnp.float32),
    }


def _reference_forward(x, params, key):
    """Pure-JAX reference with identical noise draws (un-fused formulation)."""
    alpha, w1, w2, w3, wsm = _sample(params, key)
    r1 = jnp.tanh(w1)
    r2 = jnp.tanh(x[:, :1] @ w2)
    r3 = jnp.tanh(x @ w3)
    return (r1 * alpha[0] + r2 * alpha[1] + r3 * alpha[2]) @ wsm


if __name__ == "__main__":
    root = jax.random.PRNGKey(0)
    k_params, k_x, k_noise = jax.random.split(root, 3)

    params = init_params(k_params)

    B = 8
    x = jax.random.normal(k_x, (B, FEAT), jnp.float32)

    logits = nvgs_forward(x, params, k_noise)
    logits = jax.block_until_ready(logits)

    ref = _reference_forward(x, params, k_noise)
    assert logits.shape == (B, OUT)
    assert jnp.all(jnp.isfinite(logits))
    assert jnp.allclose(logits, ref, atol=2e-5, rtol=1e-4)

    print("KERNEL_OK")
</pallas_src>

<mosaic_0001>
module attributes {stable_mosaic.version = 11 : i64} {
  func.func @_nvgs_kernel(%arg0: memref<8x32xf32, #tpu.memory_space<vmem>>, %arg1: memref<32x4xf32, #tpu.memory_space<vmem>>, %arg2: memref<8x2xf32, #tpu.memory_space<vmem>>) attributes {dimension_semantics = [], scalar_prefetch = 0 : i64, scratch_operands = 0 : i64, tpu.core_type = #tpu.core_type<tc>} {
    %c0 = arith.constant 0 : index
    %c0_0 = arith.constant 0 : index
    %0 = vector.load %arg0[%c0, %c0_0] : memref<8x32xf32, #tpu.memory_space<vmem>>, vector<8x32xf32>
    %c0_1 = arith.constant 0 : index
    %c0_2 = arith.constant 0 : index
    %1 = vector.load %arg1[%c0_1, %c0_2] : memref<32x4xf32, #tpu.memory_space<vmem>>, vector<32x4xf32>
    %cst = arith.constant dense<0.000000e+00> : vector<8x4xf32>
    %2 = tpu.matmul %0, %1, %cst {dimension_numbers = #tpu.dot_dimension_numbers<[1], [0], [0], [1], [0, 0, 1, 1], [], []>} : vector<8x32xf32>, vector<32x4xf32>, vector<8x4xf32> -> vector<8x4xf32>
    %3 = math.tanh %2 : vector<8x4xf32>
    %4 = vector.extract_strided_slice %1 {offsets = [25, 0], sizes = [4, 2], strides = [1, 1]} : vector<32x4xf32> to vector<4x2xf32>
    %5 = vector.extract_strided_slice %1 {offsets = [29, 0], sizes = [1, 2], strides = [1, 1]} : vector<32x4xf32> to vector<1x2xf32>
    %cst_3 = arith.constant dense<0.000000e+00> : vector<8x2xf32>
    %6 = tpu.matmul %3, %4, %cst_3 {dimension_numbers = #tpu.dot_dimension_numbers<[1], [0], [0], [1], [0, 0, 1, 1], [], []>} : vector<8x4xf32>, vector<4x2xf32>, vector<8x2xf32> -> vector<8x2xf32>
    %7 = vector.broadcast %5 : vector<1x2xf32> to vector<8x2xf32>
    %8 = arith.addf %6, %7 : vector<8x2xf32>
    %c0_4 = arith.constant 0 : index
    %c0_5 = arith.constant 0 : index
    %9 = vector.load %arg2[%c0_4, %c0_5] : memref<8x2xf32, #tpu.memory_space<vmem>>, vector<8x2xf32>
    tpu.vector_store %arg2[%c0_4, %c0_5], %8 {strides = array<i32>} : memref<8x2xf32, #tpu.memory_space<vmem>>, vector<8x2xf32>,
    return
  }
}

</mosaic_0001>

<llo_original>
// kernel: nvgs_forward.1
$region0: #{nvgs_forward.1}
  #allocation0 [shape = 'u32[]', space=smem, size = 0x4, offset = 0x4, fixed_abs, tag = 'smem constant byte address 0x4 - core index']
  #allocation1 [shape = 'u32[72,128]{1,0:T(1,128)}', space=vmem, size = 0x9000, scoped, tag = 'internal scratch']
  %s0 = inlined_call_operand.vmem [shape: f32[8,32], index: 0, kind: input, shape index: {}]
  %s1 = inlined_call_operand.vmem [shape: f32[32,4], index: 1, kind: input, shape index: {}]
  %s2 = inlined_call_operand.vmem [shape: f32[8,2], index: 2, kind: output, shape index: {}]
  %s3 = sld [smem:[#allocation0]]
  $region18: #{nvgs_forward.1} parent=0
    _
  %s5 = ssub.s32 1, %s3
  %s6 = scalar_select 0, %s5, %s3
  // Predicated region
  $region2: #{nvgs_forward.1} parent=0 // pred_check
    _
  $region3: #{nvgs_forward.1} parent=0 // pred_check_branch
    %8 = sbr.rel (0) target = $region5
  $region4: #{nvgs_forward.1} parent=0 // pred_region
    _
  $region5: #{nvgs_forward.1} parent=0 // pred_fallthru
    _
  // Predicated region
  $region6: #{nvgs_forward.1} parent=0 // pred_check
    _
  $region7: #{nvgs_forward.1} parent=0 // pred_check_branch
    %10 = sbr.rel (0) target = $region9
  $region8: #{nvgs_forward.1} parent=0 // pred_region
    _
  $region9: #{nvgs_forward.1} parent=0 // pred_fallthru
    _
  %v11 = vld [vmem:[%s0] sm:$0xff]
  %v12 = vld [vmem:[%s1] sm:$0xff]
  %v13 = vld [vmem:[%s1 + $0x8] sm:$0xff]
  %v14 = vld [vmem:[%s1 + $0x10] sm:$0xff]
  %v15 = vld [vmem:[%s1 + $0x18] sm:$0xff]
  %vm16 = vcmask 261120
  %v18 = vsel %vm16, %v11, 0
  %20 = vmatpush.msra.mxu0 0.0
  %21 = vmatpush.msra.mxu0 0.0
  %22 = vmatpush.msra.mxu0 0.0
  %23 = vmatpush.msra.mxu0 0.0
  %24 = vmatpush.msra.mxu0 0.0
  %25 = vmatpush.msra.mxu0 0.0
  %26 = vmatpush.msra.mxu0 0.0
  %27 = vmatpush.msra.mxu0 0.0
  %28 = vmatpush.msra.mxu0 0.0
  %29 = vmatpush.msra.mxu0 0.0
  %30 = vmatpush.msra.mxu0 0.0
  %31 = vmatpush.msra.mxu0 0.0
  %32 = vmatpush.msra.mxu0 %v15
  %33 = vmatpush.msra.mxu0 %v14
  %34 = vmatpush.msra.mxu0 %v13
  %35 = vmatpush.msra.mxu0 %v12
  %36 = vmatmul.f32.gmra.mxu0 %v18
  %v37 = vpop.f32.mrf.mxu0
  %v38 = vadd.f32 0.0, %v37
  %39 = vdwg.mxu0
  %v40 = vtanh.pop %v38
  %v41 = vperm.slane %v15, 5
  %v43 = vrot.slane %v15, 1
  %vm44 = vcmask 31744
  %v46 = vsel %vm44, %v40, 0
  %vm48 = vcmask 1043456
  %v49 = vsel %vm48, %v43, 0
  %51 = vmatpush.msra.mxu0 0.0
  %52 = vmatpush.msra.mxu0 0.0
  %53 = vmatpush.msra.mxu0 0.0
  %54 = vmatpush.msra.mxu0 0.0
  %55 = vmatpush.msra.mxu0 0.0
  %56 = vmatpush.msra.mxu0 0.0
  %57 = vmatpush.msra.mxu0 0.0
  %58 = vmatpush.msra.mxu0 0.0
  %59 = vmatpush.msra.mxu0 0.0
  %60 = vmatpush.msra.mxu0 0.0
  %61 = vmatpush.msra.mxu0 0.0
  %62 = vmatpush.msra.mxu0 0.0
  %63 = vmatpush.msra.mxu0 0.0
  %64 = vmatpush.msra.mxu0 0.0
  %65 = vmatpush.msra.mxu0 0.0
  %66 = vmatpush.msra.mxu0 %v49
  %67 = vmatmul.f32.gmra.mxu0 %v46
  %v68 = vpop.f32.mrf.mxu0
  %v69 = vadd.f32 %v41, %v68
  %70 = vdwg.mxu0
  %vm71 = vcmask 15360
  %72 = vst.msk [vmem:[%s2] sm:$0xff] %vm71, %v69
  // Predicated region
  $region10: #{nvgs_forward.1} parent=0 // pred_check
    _
  $region11: #{nvgs_forward.1} parent=0 // pred_check_branch
    %74 = sbr.rel (0) target = $region13
  $region12: #{nvgs_forward.1} parent=0 // pred_region
    _
  $region13: #{nvgs_forward.1} parent=0 // pred_fallthru
    _
  // Predicated region
  $region14: #{nvgs_forward.1} parent=0 // pred_check
    _
  $region15: #{nvgs_forward.1} parent=0 // pred_check_branch
    %76 = sbr.rel (0) target = $region17
  $region16: #{nvgs_forward.1} parent=0 // pred_region
    _
  $region17: #{nvgs_forward.1} parent=0 // pred_fallthru
    _

</llo_original>
